<compile_context>
chip_gen: v5e
topology: v5e:2x2
jax: 0.10.0
libtpu: 0.0.40
codegen_flags: <defaults>
</compile_context>

<pallas_src>
import numpy as np
import jax
import jax.numpy as jnp
from jax.experimental import pallas as pl
from jax.experimental.pallas import tpu as pltpu


# ----------------------------- parameter setup -----------------------------

def dct_mat(size):
    i = np.arange(size, dtype=np.float64)[:, None]
    j = np.arange(size, dtype=np.float64)[None, :]
    c = np.where(i == 0, np.sqrt(1.0 / size), np.sqrt(2.0 / size))
    return (c * np.cos((j + 0.5) * np.pi * i / size)).astype(np.float32)


def generate_filter(start, end, size):
    i = np.arange(size)[:, None]
    j = np.arange(size)[None, :]
    s = (i + j).astype(np.float64)
    return np.where((s > end) | (s <= start), 0.0, 1.0).astype(np.float32)


def make_lfs_params(window_size, M, key):
    """Deterministic synthetic parameters mirroring LFS_Head.__init__."""
    S = window_size
    D = dct_mat(S)                                            # (S, S) DCT matrix
    # Fused, transposed 2-D DCT operator for the (SS, P) patch layout:
    #   dct_t[(i*S+j), p] = sum_{kh,kw} KT[(i*S+j),(kh*S+kw)] * patch_t[(kh*S+kw), p]
    # with KT[(i*S+j),(kh*S+kw)] = D[i,kh] * D[j,kw]   (i.e. D @ patch @ D^T).
    KT = np.einsum('ab,dc->adbc', D, D).reshape(S * S, S * S).astype(np.float32)

    bases = np.stack([generate_filter(S * 2.0 / M * m, S * 2.0 / M * (m + 1), S)
                      for m in range(M)], axis=0)             # (M, S, S)
    ft_nums = bases.reshape(M, -1).sum(axis=1)                # (M,)

    # learnable ~ N(0, 0.1) as in Filter.__init__ (learnable.data.normal_(0., 0.1))
    learnable = 0.1 * jax.random.normal(key, (M, S, S), dtype=jnp.float32)

    return jnp.asarray(KT), jnp.asarray(bases), jnp.asarray(ft_nums), learnable


# ------------------------------ constants ----------------------------------

_EPS = np.float32(1e-15)
_INV_LN10 = np.float32(1.0 / np.log(10.0))
_LOG10_PI = np.float32(np.log10(np.pi + 1e-15))   # log10(angle) for dct < 0
_LOG10_EPS = np.float32(np.log10(1e-15))          # log10(angle + eps) for dct >= 0


# ------------------------------- Pallas kernel ------------------------------

def _lfs_kernel(pt_ref, kt_ref, w_ref, bias_ref, out_ref):
    # pt_ref : (SS, T)  bf16  transposed patch block (patch index on lanes)
    # kt_ref : (SS, SS) bf16  fused/transposed 2-D DCT operator
    # w_ref  : (2M, SS) bf16  rows [0,M): Wf/(ft_num*ln10); rows [M,2M): (Lpi-Leps)*Wf/ft_num
    # bias   : (M, 1)   f32   Leps * rowsum(Wf/ft_num)
    # out_ref: (2M, T)  f32   rows [0,M): magnitude feats; rows [M,2M): phase feats
    m = out_ref.shape[0] // 2

    dct_t = jnp.dot(kt_ref[...], pt_ref[...],
                    preferred_element_type=jnp.float32)              # (SS, T) f32

    # Magnitude operand: natural log (the 1/ln10 is folded into w_ref rows [0,M)).
    # TODO(synk): on v6e/v7x the EUP supports bf16 and a bf16 log would ~2x EUP
    # throughput, but v5e has no bf16 VPU/EUP -- keep f32 for portability/fidelity.
    log_mag = jnp.log(jnp.abs(dct_t) + _EPS).astype(jnp.bfloat16)    # (SS, T) bf16

    # Phase operand: angle(real) is pi (negative) or 0 otherwise, so the whole
    # phase branch is an exact 0/1 indicator (constants folded into w_ref/bias).
    ind = jnp.where(dct_t < 0.0, 1.0, 0.0).astype(jnp.bfloat16)      # (SS, T) bf16

    # Two single-pass bf16 matmuls with f32 accumulation.  The same (2M, SS)
    # weight block is used for both; only rows [0,M) of the first and rows
    # [M,2M) of the second are meaningful (keeps the lhs sublane-aligned at
    # 2M = 8 rows; the extra MXU work is ~12% of the DCT matmul and the MXU is
    # nowhere near the bottleneck).
    w = w_ref[...]
    mag = jnp.dot(w, log_mag, preferred_element_type=jnp.float32)    # (2M, T)
    ph = jnp.dot(w, ind, preferred_element_type=jnp.float32)         # (2M, T)

    out_ref[0:m, :] = mag[0:m, :]
    out_ref[m:, :] = ph[m:, :] + bias_ref[...]


def _lfs_pallas(pf_t, kt_bf16, w8, bias, tile):
    SS, P_pad = pf_t.shape
    M2 = w8.shape[0]                                                 # 2*M
    grid = (P_pad // tile,)
    return pl.pallas_call(
        _lfs_kernel,
        out_shape=jax.ShapeDtypeStruct((M2, P_pad), jnp.float32),
        grid=grid,
        in_specs=[pl.BlockSpec((SS, tile), lambda i: (0, i)),
                  pl.BlockSpec((SS, SS), lambda i: (0, 0)),
                  pl.BlockSpec((M2, SS), lambda i: (0, 0)),
                  pl.BlockSpec((M2 // 2, 1), lambda i: (0, 0))],
        out_specs=pl.BlockSpec((M2, tile), lambda i: (0, i)),
        compiler_params=pltpu.CompilerParams(
            dimension_semantics=("parallel",),
            vmem_limit_bytes=32 * 1024 * 1024),
    )(pf_t, kt_bf16, w8, bias)


# --------------------------------- wrapper ----------------------------------

def _round_up(x, m):
    return ((x + m - 1) // m) * m


def _choose_tiling(P, tile_target):
    """Balanced, 128-aligned tiles; even grid length (>=2 when possible) so the
    'parallel' grid axis splits across both v7x TensorCores; padding waste is
    bounded by ~128*grid instead of up to (tile-1)."""
    p128 = _round_up(max(P, 1), 128)
    g = -(-p128 // max(tile_target, 128))
    if p128 >= 256:
        g = max(g, 2)
    if g > 1 and g % 2 == 1:
        g += 1
    tile = _round_up(-(-p128 // g), 128)
    return tile, g * tile


def _prepare_inputs(x, bases, ft_nums, learnable, window_size, M):
    """XLA-side glue: grayscale, rescale, pad, unfold, folded filter weights."""
    N = x.shape[0]
    Hd = x.shape[2]
    S = window_size
    SS = S * S

    # grayscale + rescale, then bf16: the DCT consumes bf16 patches anyway, and
    # casting before the pad/unfold gathers halves the wrapper HBM traffic.
    gray = 0.299 * x[:, 0] + 0.587 * x[:, 1] + 0.114 * x[:, 2]    # (N, H, W) f32
    xs = ((gray + 1.0) * 122.5).astype(jnp.bfloat16)

    # nn.Unfold(kernel=(S,S), stride=2, padding=4)
    sa = (Hd - S + 8) // 2 + 1
    # TODO(synk): original module asserts size_after == 149 (299x299 inputs);
    # relaxed here for small synthetic shapes.
    xp = jnp.pad(xs, ((0, 0), (4, 4), (4, 4)))
    idx = 2 * jnp.arange(sa)[:, None] + jnp.arange(S)[None, :]    # (sa, S)
    rows = xp[:, idx, :]                                          # (N, sa, S, Wp)
    patches = rows[:, :, :, idx]                                  # (N, sa, S, sa, S)

    P = N * sa * sa
    # Single transposed materialization straight into the lane-dense (SS, P)
    # bf16 layout the kernel streams (no (P, SS) f32 intermediate, no extra .T).
    pf_t = jnp.transpose(patches, (2, 4, 0, 1, 3)).reshape(SS, P)  # (SS, P) bf16

    # Folded filter weights (host-side f32 math, single bf16 cast):
    #   mag rows : Wf / ln(10)                (so kernel uses natural log)
    #   phase rows: (log10(pi)-log10(eps))*Wf (applied to the 0/1 indicator)
    #   bias     : log10(eps) * rowsum(Wf)    (added to the phase rows, f32)
    filt = bases + (2.0 * jax.nn.sigmoid(learnable) - 1.0)        # (M, S, S)
    Wf = (filt / ft_nums[:, None, None]).reshape(M, SS)           # (M, SS) f32
    w_mag = Wf * _INV_LN10
    w_ph = Wf * (_LOG10_PI - _LOG10_EPS)
    w8 = jnp.concatenate([w_mag, w_ph], axis=0).astype(jnp.bfloat16)   # (2M, SS)
    bias = (_LOG10_EPS * jnp.sum(Wf, axis=1, keepdims=True)).astype(jnp.float32)
    return pf_t, w8, bias, sa, P


def lfs_head_forward(x, KT, bases, ft_nums, learnable, window_size, M, tile=8192):
    """x: (N, 3, H, W) float32 NCHW.  Returns (N, 2*M, sa, sa) float32
    (magnitude bands first, then phase bands, matching the torch module)."""
    pf_t, w8, bias, sa, P = _prepare_inputs(x, bases, ft_nums, learnable,
                                            window_size, M)
    N = x.shape[0]

    tile_eff, P_pad = _choose_tiling(P, tile)
    pf_t = jnp.pad(pf_t, ((0, 0), (0, P_pad - P)))

    out = _lfs_pallas(pf_t, KT.astype(jnp.bfloat16), w8, bias, tile_eff)  # (2M, P_pad)
    out = out[:, :P].reshape(2 * M, N, sa, sa)
    return jnp.transpose(out, (1, 0, 2, 3))                               # (N, 2M, sa, sa)


# ----------------------------- reference (JAX) ------------------------------

def _reference(pf_t, KT, bases, ft_nums, learnable, M):
    """Original-module math in f32.  Only the DCT uses the same bf16 operands as
    the kernel, so that sign(dct) -- which drives the phase branch -- is
    consistent between kernel and reference; the log/filter path stays f32."""
    dct = jnp.dot(KT.astype(jnp.bfloat16), pf_t,
                  preferred_element_type=jnp.float32)                 # (SS, P)
    log_mag = jnp.log10(jnp.abs(dct) + 1e-15)
    ang = jnp.where(dct < 0, jnp.float32(np.pi), jnp.float32(0.0))
    log_ph = jnp.log10(jnp.abs(ang) + 1e-15)
    filt = bases + (2.0 * jax.nn.sigmoid(learnable) - 1.0)
    Wf = (filt / ft_nums[:, None, None]).reshape(M, -1)               # (M, SS) f32
    mag = Wf @ log_mag
    ph = Wf @ log_ph
    return jnp.concatenate([mag, ph], axis=0)                         # (2M, P)


if __name__ == "__main__":
    key = jax.random.PRNGKey(0)
    k_x, k_learn = jax.random.split(key)

    # small shapes: batch=2, RGB, 16x16 spatial, window_size=8, M=4 bands
    N, Hd, Wd = 2, 16, 16
    S, M = 8, 4

    x = jax.random.normal(k_x, (N, 3, Hd, Wd), dtype=jnp.float32)
    KT, bases, ft_nums, learnable = make_lfs_params(S, M, k_learn)

    out = lfs_head_forward(x, KT, bases, ft_nums, learnable, S, M)
    out = jax.block_until_ready(out)

    sa = (Hd - S + 8) // 2 + 1
    assert out.shape == (N, 2 * M, sa, sa), out.shape

    # Cross-check against original-module math kept in f32 (shared bf16 DCT
    # operands for phase-sign consistency).
    pf_t, _, _, sa2, P = _prepare_inputs(x, bases, ft_nums, learnable, S, M)
    ref = _reference(pf_t, KT, bases, ft_nums, learnable, M)
    ref = jnp.transpose(ref.reshape(2 * M, N, sa, sa), (1, 0, 2, 3))

    # Tolerance covers the kernel's bf16 filter-weight / log-operand rounding
    # (the reference keeps the filter path in f32); the DCT itself uses
    # identical bf16 operands with f32 accumulation on both sides.
    np.testing.assert_allclose(np.asarray(out), np.asarray(ref),
                               rtol=2e-2, atol=1e-1)
    print("KERNEL_OK")
</pallas_src>

<mosaic_0001>
module attributes {stable_mosaic.version = 11 : i64} {
  func.func @_lfs_kernel(%arg0: i32, %arg1: memref<64x128xbf16, #tpu.memory_space<vmem>>, %arg2: memref<64x64xbf16, #tpu.memory_space<vmem>>, %arg3: memref<8x64xbf16, #tpu.memory_space<vmem>>, %arg4: memref<4x1xf32, #tpu.memory_space<vmem>>, %arg5: memref<8x128xf32, #tpu.memory_space<vmem>>) attributes {dimension_semantics = [#tpu.dimension_semantics<parallel>], iteration_bounds = array<i64: 2>, scalar_prefetch = 0 : i64, scratch_operands = 0 : i64, tpu.core_type = #tpu.core_type<tc>, window_params = [{transform_indices = @transform_0, window_bounds = array<i64: 64, 128>}, {pipeline_mode = #tpu.pipeline_mode<synchronous>, transform_indices = @transform_1, window_bounds = array<i64: 64, 64>}, {pipeline_mode = #tpu.pipeline_mode<synchronous>, transform_indices = @transform_2, window_bounds = array<i64: 8, 64>}, {pipeline_mode = #tpu.pipeline_mode<synchronous>, transform_indices = @transform_3, window_bounds = array<i64: 4, 1>}, {transform_indices = @transform_4, window_bounds = array<i64: 8, 128>}]} {
    %c0 = arith.constant 0 : index
    %c0_0 = arith.constant 0 : index
    %0 = vector.load %arg2[%c0, %c0_0] : memref<64x64xbf16, #tpu.memory_space<vmem>>, vector<64x64xbf16>
    %c0_1 = arith.constant 0 : index
    %c0_2 = arith.constant 0 : index
    %1 = vector.load %arg1[%c0_1, %c0_2] : memref<64x128xbf16, #tpu.memory_space<vmem>>, vector<64x128xbf16>
    %cst = arith.constant dense<0.000000e+00> : vector<64x128xf32>
    %2 = tpu.matmul %0, %1, %cst {dimension_numbers = #tpu.dot_dimension_numbers<[1], [0], [0], [1], [0, 0, 1, 1], [], []>} : vector<64x64xbf16>, vector<64x128xbf16>, vector<64x128xf32> -> vector<64x128xf32>
    %3 = math.absf %2 : vector<64x128xf32>
    %cst_3 = arith.constant 1.000000e-15 : f32
    %4 = vector.broadcast %cst_3 : f32 to vector<64x128xf32>
    %5 = arith.addf %3, %4 : vector<64x128xf32>
    %6 = math.log %5 : vector<64x128xf32>
    %7 = arith.truncf %6 : vector<64x128xf32> to vector<64x128xbf16>
    %cst_4 = arith.constant 0.000000e+00 : f32
    %8 = vector.broadcast %cst_4 : f32 to vector<64x128xf32>
    %9 = arith.cmpf olt, %2, %8 : vector<64x128xf32>
    %cst_5 = arith.constant 1.000000e+00 : f32
    %cst_6 = arith.constant 0.000000e+00 : f32
    %10 = vector.broadcast %cst_5 : f32 to vector<64x128xf32>
    %11 = vector.broadcast %cst_6 : f32 to vector<64x128xf32>
    %12 = arith.select %9, %10, %11 : vector<64x128xi1>, vector<64x128xf32>
    %13 = arith.truncf %12 : vector<64x128xf32> to vector<64x128xbf16>
    %c0_7 = arith.constant 0 : index
    %c0_8 = arith.constant 0 : index
    %14 = vector.load %arg3[%c0_7, %c0_8] : memref<8x64xbf16, #tpu.memory_space<vmem>>, vector<8x64xbf16>
    %cst_9 = arith.constant dense<0.000000e+00> : vector<8x128xf32>
    %15 = tpu.matmul %14, %7, %cst_9 {dimension_numbers = #tpu.dot_dimension_numbers<[1], [0], [0], [1], [0, 0, 1, 1], [], []>} : vector<8x64xbf16>, vector<64x128xbf16>, vector<8x128xf32> -> vector<8x128xf32>
    %cst_10 = arith.constant dense<0.000000e+00> : vector<8x128xf32>
    %16 = tpu.matmul %14, %13, %cst_10 {dimension_numbers = #tpu.dot_dimension_numbers<[1], [0], [0], [1], [0, 0, 1, 1], [], []>} : vector<8x64xbf16>, vector<64x128xbf16>, vector<8x128xf32> -> vector<8x128xf32>
    %17 = vector.extract_strided_slice %15 {offsets = [0, 0], sizes = [4, 128], strides = [1, 1]} : vector<8x128xf32> to vector<4x128xf32>
    %c0_11 = arith.constant 0 : index
    %c0_12 = arith.constant 0 : index
    %18 = vector.load %arg5[%c0_11, %c0_12] : memref<8x128xf32, #tpu.memory_space<vmem>>, vector<4x128xf32>
    tpu.vector_store %arg5[%c0_11, %c0_12], %17 {strides = array<i32>} : memref<8x128xf32, #tpu.memory_space<vmem>>, vector<4x128xf32>,
    %19 = vector.extract_strided_slice %16 {offsets = [4, 0], sizes = [4, 128], strides = [1, 1]} : vector<8x128xf32> to vector<4x128xf32>
    %c0_13 = arith.constant 0 : index
    %c0_14 = arith.constant 0 : index
    %20 = vector.load %arg4[%c0_13, %c0_14] : memref<4x1xf32, #tpu.memory_space<vmem>>, vector<4x1xf32>
    %21 = vector.broadcast %20 : vector<4x1xf32> to vector<4x128xf32>
    %22 = arith.addf %19, %21 : vector<4x128xf32>
    %c4 = arith.constant 4 : index
    %c0_15 = arith.constant 0 : index
    %23 = vector.load %arg5[%c4, %c0_15] : memref<8x128xf32, #tpu.memory_space<vmem>>, vector<4x128xf32>
    tpu.vector_store %arg5[%c4, %c0_15], %22 {strides = array<i32>} : memref<8x128xf32, #tpu.memory_space<vmem>>, vector<4x128xf32>,
    return
  }
  func.func @transform_0(%arg0: i32) -> (i32, i32) {
    %c0_i32 = arith.constant 0 : i32
    %c0_i32_0 = arith.constant 0 : i32
    return %c0_i32, %arg0 : i32, i32
  }
  func.func @transform_1(%arg0: i32) -> (i32, i32) {
    %c0_i32 = arith.constant 0 : i32
    %c0_i32_0 = arith.constant 0 : i32
    %c0_i32_1 = arith.constant 0 : i32
    return %c0_i32, %c0_i32_0 : i32, i32
  }
  func.func @transform_2(%arg0: i32) -> (i32, i32) {
    %c0_i32 = arith.constant 0 : i32
    %c0_i32_0 = arith.constant 0 : i32
    %c0_i32_1 = arith.constant 0 : i32
    return %c0_i32, %c0_i32_0 : i32, i32
  }
  func.func @transform_3(%arg0: i32) -> (i32, i32) {
    %c0_i32 = arith.constant 0 : i32
    %c0_i32_0 = arith.constant 0 : i32
    %c0_i32_1 = arith.constant 0 : i32
    return %c0_i32, %c0_i32_0 : i32, i32
  }
  func.func @transform_4(%arg0: i32) -> (i32, i32) {
    %c0_i32 = arith.constant 0 : i32
    %c0_i32_0 = arith.constant 0 : i32
    return %c0_i32, %arg0 : i32, i32
  }
}

</mosaic_0001>

<llo_original>
// kernel: tpu_custom_call.1
$region0: #{tpu_custom_call.1}
  #allocation0 [shape = 'u32[]', space=smem, size = 0x4, offset = 0x4, fixed_abs, tag = 'smem constant byte address 0x4 - core index']
  #allocation1 [shape = 'u32[72,128]{1,0:T(1,128)}', space=vmem, size = 0x9000, scoped, tag = 'internal scratch']
  %s0 = inlined_call_operand.hbm [shape: bf16[64,256], index: 0, kind: input, shape index: {}]
  %s1 = inlined_call_operand.hbm [shape: bf16[64,64], index: 1, kind: input, shape index: {}]
  %s2 = inlined_call_operand.vmem [shape: bf16[8,64], index: 2, kind: input, shape index: {}]
  %s3 = inlined_call_operand.vmem [shape: f32[4,1], index: 3, kind: input, shape index: {}]
  %s4 = inlined_call_operand.hbm [shape: f32[8,256], index: 4, kind: output, shape index: {}]
  %s5 = sld [smem:[#allocation0]]
  $region57: #{tpu_custom_call.1} parent=0
    _
  %s7 = ssub.s32 1, %s5
  %s8 = scalar_select 0, %s7, %s5
  $region1: #{tpu_custom_call.1} parent=0
    #allocation2 [shape = 'u8[32768]{0}', space=vmem, size = 0x8000, scoped, tag = 'input window, operand 0']
    #allocation3 [shape = 's32[2]{0}', space=sflag, size = 0x8, scoped, tag = 'scoped memory for tpu_custom_call.1']
    #allocation4 [shape = 's32[2]{0}', space=sflag, size = 0x8, scoped, tag = 'scoped memory for tpu_custom_call.1']
    #allocation5 [shape = 'u8[16384]{0}', space=vmem, size = 0x4000, scoped, tag = 'input window, operand 1, single buffered']
    #allocation6 [shape = 's32[1]{0}', space=sflag, size = 0x4, scoped, tag = 'scoped memory for tpu_custom_call.1']
    #allocation7 [shape = 'u8[8192]{0}', space=vmem, size = 0x2000, scoped, tag = 'output window, operand 0']
    %9 = vsyncpa [#allocation3], 0
    %s10 = scalar_lea.sflag [#allocation3], 1
    %11 = vsyncpa %s10, 0
    %12 = vsyncpa [#allocation6], 0
    %13 = vsyncpa [#allocation4], 0
    %s14 = scalar_lea.sflag [#allocation4], 1
    %15 = vsyncpa %s14, 0
    loop: start=0, step=1, limit=4
    $region2: #{tpu_custom_call.1} parent=1 // loop_pre_header
      _
    $region3: #{tpu_custom_call.1} parent=1 // loop_header
      %s17 = sphi 0, %s21
      %p18 = scmp.ge.s32.totalorder %s17, 4
      %s27 = sphi 0, %s29
      %s30 = sphi 0, %s27
      %s31 = sphi 0, %s30
      %s47 = sphi 0, %s31
      %s51 = sphi 0, %s51
      %s53 = sphi 0, %s51
      %s54 = sphi 0, %s53
      %s68 = sphi 0, %s54
      %s72 = sphi 0, %s72
      %s74 = sphi 0, %s72
      %s75 = sphi 0, %s74
      %s89 = sphi 0, %s75
      %s93 = sphi 0, %s93
      %s95 = sphi 0, %s93
      %s96 = sphi 0, %s95
      %s110 = sphi 0, %s96
      %s116 = sphi 0, %s118
      %s119 = sphi 0, %s116
      %s120 = sphi 0, %s119
      %s136 = sphi 0, %s120
    $region4: #{tpu_custom_call.1} parent=1 // loop_header_branch
      %20 = sbr.rel (%p18) target = $region8
    $region5: #{tpu_custom_call.1} parent=1 // loop_body
      %s22 = ssub.s32 %s17, 1
      %s23 = ssub.s32 %s17, 2
      %s24 = sadd.s32 %s17, 1
      %s25 = ssub.s32 %s17, %s24
      %p26 = scmp.eq.s32.totalorder %s25, 0
      %s28 = sadd.s32 %s27, 1
      %s29 = scalar_select %p26, %s27, %s28
      %p32 = pneg %p26
      %p33 = scmp.eq.s32.totalorder %s17, 1
      %p34 = por %p32, %p33
      %p35 = scmp.ne.s32.totalorder %s27, %s30
      %p36 = scmp.eq.s32.totalorder %s17, 0
      %p37 = por %p35, %p36
      %p38 = scmp.ne.s32.totalorder %s27, %s30
      %p39 = scmp.eq.s32.totalorder %s22, 1
      %p40 = por %p38, %p39
      %p41 = scmp.ne.s32.totalorder %s30, %s31
      %p42 = scmp.eq.s32.totalorder %s22, 0
      %p43 = por %p41, %p42
      %p44 = scmp.ne.s32.totalorder %s30, %s31
      %p45 = scmp.eq.s32.totalorder %s23, 1
      %p46 = por %p44, %p45
      %p48 = scmp.ne.s32.totalorder %s31, %s47
      %p49 = scmp.eq.s32.totalorder %s23, 0
      %p50 = por %p48, %p49
      %s52 = sadd.s32 %s51, 1
      %p55 = scmp.eq.s32.totalorder %s17, 1
      %p56 = scmp.ne.s32.totalorder %s51, %s53
      %p57 = scmp.eq.s32.totalorder %s17, 0
      %p58 = por %p56, %p57
      %p59 = scmp.ne.s32.totalorder %s51, %s53
      %p60 = scmp.eq.s32.totalorder %s22, 1
      %p61 = por %p59, %p60
      %p62 = scmp.ne.s32.totalorder %s53, %s54
      %p63 = scmp.eq.s32.totalorder %s22, 0
      %p64 = por %p62, %p63
      %p65 = scmp.ne.s32.totalorder %s53, %s54
      %p66 = scmp.eq.s32.totalorder %s23, 1
      %p67 = por %p65, %p66
      %p69 = scmp.ne.s32.totalorder %s54, %s68
      %p70 = scmp.eq.s32.totalorder %s23, 0
      %p71 = por %p69, %p70
      %s73 = sadd.s32 %s72, 1
      %p76 = scmp.eq.s32.totalorder %s17, 1
      %p77 = scmp.ne.s32.totalorder %s72, %s74
      %p78 = scmp.eq.s32.totalorder %s17, 0
      %p79 = por %p77, %p78
      %p80 = scmp.ne.s32.totalorder %s72, %s74
      %p81 = scmp.eq.s32.totalorder %s22, 1
      %p82 = por %p80, %p81
      %p83 = scmp.ne.s32.totalorder %s74, %s75
      %p84 = scmp.eq.s32.totalorder %s22, 0
      %p85 = por %p83, %p84
      %p86 = scmp.ne.s32.totalorder %s74, %s75
      %p87 = scmp.eq.s32.totalorder %s23, 1
      %p88 = por %p86, %p87
      %p90 = scmp.ne.s32.totalorder %s75, %s89
      %p91 = scmp.eq.s32.totalorder %s23, 0
      %p92 = por %p90, %p91
      %s94 = sadd.s32 %s93, 1
      %p97 = scmp.eq.s32.totalorder %s17, 1
      %p98 = scmp.ne.s32.totalorder %s93, %s95
      %p99 = scmp.eq.s32.totalorder %s17, 0
      %p100 = por %p98, %p99
      %p101 = scmp.ne.s32.totalorder %s93, %s95
      %p102 = scmp.eq.s32.totalorder %s22, 1
      %p103 = por %p101, %p102
      %p104 = scmp.ne.s32.totalorder %s95, %s96
      %p105 = scmp.eq.s32.totalorder %s22, 0
      %p106 = por %p104, %p105
      %p107 = scmp.ne.s32.totalorder %s95, %s96
      %p108 = scmp.eq.s32.totalorder %s23, 1
      %p109 = por %p107, %p108
      %p111 = scmp.ne.s32.totalorder %s96, %s110
      %p112 = scmp.eq.s32.totalorder %s23, 0
      %p113 = por %p111, %p112
      %s114 = ssub.s32 %s17, %s24
      %p115 = scmp.eq.s32.totalorder %s114, 0
      %s117 = sadd.s32 %s116, 1
      %s118 = scalar_select %p115, %s116, %s117
      %p121 = pneg %p115
      %p122 = scmp.eq.s32.totalorder %s17, 1
      %p123 = por %p121, %p122
      %p124 = scmp.ne.s32.totalorder %s116, %s119
      %p125 = scmp.eq.s32.totalorder %s17, 0
      %p126 = por %p124, %p125
      %p127 = scmp.ne.s32.totalorder %s116, %s119
      %p128 = scmp.eq.s32.totalorder %s22, 1
      %p129 = por %p127, %p128
      %p130 = scmp.ne.s32.totalorder %s119, %s120
      %p131 = scmp.eq.s32.totalorder %s22, 0
      %p132 = por %p130, %p131
      %p133 = scmp.ne.s32.totalorder %s119, %s120
      %p134 = scmp.eq.s32.totalorder %s23, 1
      %p135 = por %p133, %p134
      %p137 = scmp.ne.s32.totalorder %s120, %s136
      %p138 = scmp.eq.s32.totalorder %s23, 0
      %p139 = por %p137, %p138
      %p140 = scmp.le.s32.totalorder 1, %s17
      %p141 = scmp.lt.s32.totalorder %s17, 3
      %p142 = pnand %p140, %p141
      %p143 = pneg %p142
      // Predicated region
      $region9: #{tpu_custom_call.1} parent=5 // pred_check
        _
      $region10: #{tpu_custom_call.1} parent=5 // pred_check_branch
        %145 = sbr.rel (%p142) target = $region12
      $region11: #{tpu_custom_call.1} parent=5 // pred_region
        %s146 = ssub.s32 %s17, 1
        // Predicated region
        $region13: #{tpu_custom_call.1} parent=11 // pred_check
          %p147 = pneg %p64
        $region14: #{tpu_custom_call.1} parent=11 // pred_check_branch
          %149 = sbr.rel (%p147) target = $region16
        $region15: #{tpu_custom_call.1} parent=11 // pred_region
          %151 = vsyncadd [#allocation6], 0
          %s152 = sshll.u32 %s1, 4
          %s153 = int_to_ptr.hbm [resolvable:$true] %s152
          %s154 = sshll.u32 [#allocation5], 4
          %s155 = int_to_ptr.vmem [resolvable:$true] %s154
          %160 = dma.hbm_to_vmem [thread:$0]  %s153, 512, %s155, [#allocation6], 64, 64, 4
        $region16: #{tpu_custom_call.1} parent=11 // pred_fallthru
          _
        // Predicated region
        $region17: #{tpu_custom_call.1} parent=11 // pred_check
          %p161 = pneg %p85
        $region18: #{tpu_custom_call.1} parent=11 // pred_check_branch
          %163 = sbr.rel (%p161) target = $region20
        $region19: #{tpu_custom_call.1} parent=11 // pred_region
          _
        $region20: #{tpu_custom_call.1} parent=11 // pred_fallthru
          _
        // Predicated region
        $region21: #{tpu_custom_call.1} parent=11 // pred_check
          %p164 = pneg %p106
        $region22: #{tpu_custom_call.1} parent=11 // pred_check_branch
          %166 = sbr.rel (%p164) target = $region24
        $region23: #{tpu_custom_call.1} parent=11 // pred_region
          _
        $region24: #{tpu_custom_call.1} parent=11 // pred_fallthru
          _
      $region12: #{tpu_custom_call.1} parent=5 // pred_fallthru
        _
      %p167 = scmp.lt.s32.totalorder %s17, 2
      // Predicated region
      $region25: #{tpu_custom_call.1} parent=5 // pred_check
        %p168 = pneg %p167
      $region26: #{tpu_custom_call.1} parent=5 // pred_check_branch
        %170 = sbr.rel (%p168) target = $region28
      $region27: #{tpu_custom_call.1} parent=5 // pred_region
        // Predicated region
        $region29: #{tpu_custom_call.1} parent=27 // pred_check
          %p171 = pneg %p37
        $region30: #{tpu_custom_call.1} parent=27 // pred_check_branch
          %173 = sbr.rel (%p171) target = $region32
        $region31: #{tpu_custom_call.1} parent=27 // pred_region
          %s174 = sand.u32 %s27, 1
          %s175 = scalar_lea.sflag [#allocation3], %s174
          %s176 = sand.u32 %s27, 1
          %s177 = smul.addr %s176, 32
          %s178 = scalar_lea.vmem [#allocation2], %s177
          %180 = vsyncadd %s175, 0
          %s181 = smul.addr %s17, 4
          %s182 = scalar_lea.hbm %s0, %s181
          %s183 = sshll.u32 %s182, 4
          %s184 = int_to_ptr.hbm [resolvable:$true] %s183
          %s185 = sshll.u32 %s178, 4
          %s186 = int_to_ptr.vmem [resolvable:$true] %s185
          %191 = dma.hbm_to_vmem [thread:$0]  %s184, 512, %s186, %s175, 128, 64, 4
        $region32: #{tpu_custom_call.1} parent=27 // pred_fallthru
          _
      $region28: #{tpu_custom_call.1} parent=5 // pred_fallthru
        _
      %p192 = scmp.le.s32.totalorder 1, %s17
      %p193 = scmp.lt.s32.totalorder %s17, 3
      %p194 = pnand %p192, %p193
      %p195 = pneg %p194
      // Predicated region
      $region33: #{tpu_custom_call.1} parent=5 // pred_check
        _
      $region34: #{tpu_custom_call.1} parent=5 // pred_check_branch
        %197 = sbr.rel (%p194) target = $region36
      $region35: #{tpu_custom_call.1} parent=5 // pred_region
        %s198 = ssub.s32 %s17, 1
        %s199 = sand.u32 %s30, 1
        %s200 = scalar_lea.sflag [#allocation3], %s199
        %s201 = sand.u32 %s30, 1
        %s202 = smul.addr %s201, 32
        %s203 = scalar_lea.vmem [#allocation2], %s202
        // Predicated region
        $region37: #{tpu_custom_call.1} parent=35 // pred_check
          %p204 = pneg %p43
        $region38: #{tpu_custom_call.1} parent=35 // pred_check_branch
          %206 = sbr.rel (%p204) target = $region40
        $region39: #{tpu_custom_call.1} parent=35 // pred_region
          %208 = dma.done %s200, 512
        $region40: #{tpu_custom_call.1} parent=35 // pred_fallthru
          _
        // Predicated region
        $region41: #{tpu_custom_call.1} parent=35 // pred_check
          %p209 = pneg %p64
        $region42: #{tpu_custom_call.1} parent=35 // pred_check_branch
          %211 = sbr.rel (%p209) target = $region44
        $region43: #{tpu_custom_call.1} parent=35 // pred_region
          %213 = dma.done [#allocation6], 512
        $region44: #{tpu_custom_call.1} parent=35 // pred_fallthru
          _
        %s214 = sand.u32 %s30, 1
        %s215 = scalar_lea.sflag [#allocation3], %s214
        %s216 = sand.u32 %s30, 1
        %s217 = smul.addr %s216, 32
        %s218 = scalar_lea.vmem [#allocation2], %s217
        %p219 = pneg %p43
        %p220 = pneg %p40
        %p221 = pneg %p64
        %p222 = pneg %p61
        %p223 = pneg %p85
        %p224 = pneg %p82
        %p225 = pneg %p106
        %p226 = pneg %p103
        %p227 = pneg %p132
        %p228 = pneg %p129
        %s229 = sand.u32 %s119, 1
        %s230 = scalar_lea.sflag [#allocation4], %s229
        %s231 = sand.u32 %s119, 1
        %s232 = smul.addr %s231, 8
        %s233 = scalar_lea.vmem [#allocation7], %s232
        %v235 = vld [vmem:[#allocation5] sm:$0xf]
        %v236 = vld [vmem:[#allocation5 + $0x4] sm:$0xf]
        %v237 = vld [vmem:[#allocation5 + $0x8] sm:$0xf]
        %v238 = vld [vmem:[#allocation5 + $0xc] sm:$0xf]
        %v239 = vld [vmem:[#allocation5 + $0x10] sm:$0xf]
        %v240 = vld [vmem:[#allocation5 + $0x14] sm:$0xf]
        %v241 = vld [vmem:[#allocation5 + $0x18] sm:$0xf]
        %v242 = vld [vmem:[#allocation5 + $0x1c] sm:$0xf]
        %v243 = vld [vmem:[%s203] sm:$0xf]
        %v244 = vld [vmem:[%s203 + $0x4] sm:$0xf]
        %v245 = vld [vmem:[%s203 + $0x8] sm:$0xf]
        %v246 = vld [vmem:[%s203 + $0xc] sm:$0xf]
        %v247 = vld [vmem:[%s203 + $0x10] sm:$0xf]
        %v248 = vld [vmem:[%s203 + $0x14] sm:$0xf]
        %v249 = vld [vmem:[%s203 + $0x18] sm:$0xf]
        %v250 = vld [vmem:[%s203 + $0x1c] sm:$0xf]
        %v259 = vunpack.c.l.b16 %v235
        %v260 = vunpack.c.l.b16 %v236
        %v261 = vunpack.c.l.b16 %v237
        %v262 = vunpack.c.l.b16 %v238
        %v263 = vunpack.c.l.b16 %v239
        %v264 = vunpack.c.l.b16 %v240
        %v265 = vunpack.c.l.b16 %v241
        %v266 = vunpack.c.l.b16 %v242
        %v267 = vpack.c.b16 %v260, %v259
        %v268 = vpack.c.b16 %v262, %v261
        %v269 = vpack.c.b16 %v264, %v263
        %v270 = vpack.c.b16 %v266, %v265
        %v279 = vunpack.c.l.b16 %v243
        %v280 = vunpack.c.l.b16 %v244
        %v281 = vunpack.c.l.b16 %v245
        %v282 = vunpack.c.l.b16 %v246
        %v283 = vunpack.c.l.b16 %v247
        %v284 = vunpack.c.l.b16 %v248
        %v285 = vunpack.c.l.b16 %v249
        %v286 = vunpack.c.l.b16 %v250
        %v287 = vpack.c.b16 %v280, %v279
        %v288 = vpack.c.b16 %v282, %v281
        %v289 = vpack.c.b16 %v284, %v283
        %v290 = vpack.c.b16 %v286, %v285
        %vm295 = vcmask 523264
        %v297 = vsel %vm295, %v267, 0
        %v300 = vsel %vm295, %v268, 0
        %v303 = vsel %vm295, %v269, 0
        %v306 = vsel %vm295, %v270, 0
        %308 = vmatpush.bf16.msra.mxu0 0
        %309 = vmatpush.bf16.msra.mxu0 0
        %310 = vmatpush.bf16.msra.mxu0 0
        %311 = vmatpush.bf16.msra.mxu0 0
        %312 = vmatpush.bf16.msra.mxu0 %v290
        %313 = vmatpush.bf16.msra.mxu0 %v289
        %314 = vmatpush.bf16.msra.mxu0 %v288
        %315 = vmatpush.bf16.msra.mxu0 %v287
        %316 = vmatmul.bf16.gmra.mxu0 %v297
        %v317 = vpop.f32.mrf.mxu0
        %v318 = vadd.f32 0.0, %v317
        %v319 = vpop.f32.mrf.mxu0
        %v320 = vadd.f32 0.0, %v319
        %321 = vmatmul.bf16.gmra.mxu0 %v300
        %v322 = vpop.f32.mrf.mxu0
        %v323 = vadd.f32 0.0, %v322
        %v324 = vpop.f32.mrf.mxu0
        %v325 = vadd.f32 0.0, %v324
        %326 = vmatmul.bf16.gmra.mxu0 %v303
        %v327 = vpop.f32.mrf.mxu0
        %v328 = vadd.f32 0.0, %v327
        %v329 = vpop.f32.mrf.mxu0
        %v330 = vadd.f32 0.0, %v329
        %331 = vmatmul.bf16.gmra.mxu0 %v306
        %v332 = vpop.f32.mrf.mxu0
        %v333 = vadd.f32 0.0, %v332
        %v334 = vpop.f32.mrf.mxu0
        %v335 = vadd.f32 0.0, %v334
        %336 = vdwg.mxu0
        %v337 = vand.u32 2147483647, %v318
        %v338 = vand.u32 2147483647, %v320
        %v339 = vand.u32 2147483647, %v323
        %v340 = vand.u32 2147483647, %v325
        %v341 = vand.u32 2147483647, %v328
        %v342 = vand.u32 2147483647, %v330
        %v343 = vand.u32 2147483647, %v333
        %v344 = vand.u32 2147483647, %v335
        %v345 = vadd.f32 %v337, 1e-15
        %v346 = vadd.f32 %v338, 1e-15
        %v347 = vadd.f32 %v339, 1e-15
        %v348 = vadd.f32 %v340, 1e-15
        %v349 = vadd.f32 %v341, 1e-15
        %v350 = vadd.f32 %v342, 1e-15
        %v351 = vadd.f32 %v343, 1e-15
        %v352 = vadd.f32 %v344, 1e-15
        %v353 = vlog2.pop %v345
        %v354 = vmul.f32 %v353, 0.6931472
        %v355 = vlog2.pop %v346
        %v356 = vmul.f32 %v355, 0.6931472
        %v357 = vlog2.pop %v347
        %v358 = vmul.f32 %v357, 0.6931472
        %v359 = vlog2.pop %v348
        %v360 = vmul.f32 %v359, 0.6931472
        %v361 = vlog2.pop %v349
        %v362 = vmul.f32 %v361, 0.6931472
        %v363 = vlog2.pop %v350
        %v364 = vmul.f32 %v363, 0.6931472
        %v365 = vlog2.pop %v351
        %v366 = vmul.f32 %v365, 0.6931472
        %v367 = vlog2.pop %v352
        %v368 = vmul.f32 %v367, 0.6931472
        %v369 = vpack.c.bf16 %v356, %v354
        %v370 = vpack.c.bf16 %v360, %v358
        %v371 = vpack.c.bf16 %v364, %v362
        %v372 = vpack.c.bf16 %v368, %v366
        %vm373 = vcmp.lt.f32.partialorder %v318, 0.0
        %vm374 = vcmp.lt.f32.partialorder %v320, 0.0
        %vm375 = vcmp.lt.f32.partialorder %v323, 0.0
        %vm376 = vcmp.lt.f32.partialorder %v325, 0.0
        %vm377 = vcmp.lt.f32.partialorder %v328, 0.0
        %vm378 = vcmp.lt.f32.partialorder %v330, 0.0
        %vm379 = vcmp.lt.f32.partialorder %v333, 0.0
        %vm380 = vcmp.lt.f32.partialorder %v335, 0.0
        %v381 = vsel %vm373, 1.0, 0.0
        %v382 = vsel %vm374, 1.0, 0.0
        %v383 = vsel %vm375, 1.0, 0.0
        %v384 = vsel %vm376, 1.0, 0.0
        %v385 = vsel %vm377, 1.0, 0.0
        %v386 = vsel %vm378, 1.0, 0.0
        %v387 = vsel %vm379, 1.0, 0.0
        %v388 = vsel %vm380, 1.0, 0.0
        %v389 = vpack.c.bf16 %v382, %v381
        %v390 = vpack.c.bf16 %v384, %v383
        %v391 = vpack.c.bf16 %v386, %v385
        %v392 = vpack.c.bf16 %v388, %v387
        %v393 = vld [vmem:[%s2] sm:$0xf]
        %v395 = vsel %vm295, %v393, 0
        %397 = vmatpush.bf16.msra.mxu0 0
        %398 = vmatpush.bf16.msra.mxu0 0
        %399 = vmatpush.bf16.msra.mxu0 0
        %400 = vmatpush.bf16.msra.mxu0 0
        %401 = vmatpush.bf16.msra.mxu0 %v372
        %402 = vmatpush.bf16.msra.mxu0 %v371
        %403 = vmatpush.bf16.msra.mxu0 %v370
        %404 = vmatpush.bf16.msra.mxu0 %v369
        %405 = vmatmul.bf16.gmra.mxu0 %v395
        %v406 = vpop.f32.mrf.mxu0
        %v407 = vadd.f32 0.0, %v406
        %v408 = vpop.f32.mrf.mxu0
        %409 = vdwg.mxu0
        %410 = vmatpush.bf16.msra.mxu0 0
        %411 = vmatpush.bf16.msra.mxu0 0
        %412 = vmatpush.bf16.msra.mxu0 0
        %413 = vmatpush.bf16.msra.mxu0 0
        %414 = vmatpush.bf16.msra.mxu0 %v392
        %415 = vmatpush.bf16.msra.mxu0 %v391
        %416 = vmatpush.bf16.msra.mxu0 %v390
        %417 = vmatpush.bf16.msra.mxu0 %v389
        %418 = vmatmul.bf16.gmra.mxu0 %v395
        %v419 = vpop.f32.mrf.mxu0
        %v420 = vadd.f32 0.0, %v419
        %v421 = vpop.f32.mrf.mxu0
        %422 = vdwg.mxu0
        %423 = vst [vmem:[%s233] sm:$0xf] %v407
        %v424 = vld [vmem:[%s3] sm:$0xf]
        %426 = vset.pattern.permute.xlu0 0
        %427 = vperm.xlu0 %426, %v424
        %v428 = vpop.permute.xlu0 %427
        %v429 = vrot.slane %v428, 4
        %v431 = vadd.f32 %v420, %v429
        %432 = vst [vmem:[%s233] sm:$0xf0] %v431
        %s433 = sand.u32 %s119, 1
        %s434 = scalar_lea.sflag [#allocation4], %s433
        %s435 = sand.u32 %s119, 1
        %s436 = smul.addr %s435, 8
        %s437 = scalar_lea.vmem [#allocation7], %s436
        // Predicated region
        $region45: #{tpu_custom_call.1} parent=35 // pred_check
          %p438 = pneg %p129
        $region46: #{tpu_custom_call.1} parent=35 // pred_check_branch
          %440 = sbr.rel (%p438) target = $region48
        $region47: #{tpu_custom_call.1} parent=35 // pred_region
          %442 = vsyncadd %s434, 0
          %s443 = smul.addr %s22, 8
          %s444 = scalar_lea.hbm %s4, %s443
          %s446 = sshll.u32 %s437, 4
          %s447 = int_to_ptr.vmem [resolvable:$true] %s446
          %s448 = sshll.u32 %s444, 4
          %s449 = int_to_ptr.hbm [resolvable:$true] %s448
          %451 = dma.vmem_to_hbm [thread:$0]  %s447, 128, %s449, %s434
        $region48: #{tpu_custom_call.1} parent=35 // pred_fallthru
          _
      $region36: #{tpu_custom_call.1} parent=5 // pred_fallthru
        _
      %p452 = scmp.le.s32.totalorder 2, %s17
      // Predicated region
      $region49: #{tpu_custom_call.1} parent=5 // pred_check
        %p453 = pneg %p452
      $region50: #{tpu_custom_call.1} parent=5 // pred_check_branch
        %455 = sbr.rel (%p453) target = $region52
      $region51: #{tpu_custom_call.1} parent=5 // pred_region
        %s456 = ssub.s32 %s17, 2
        // Predicated region
        $region53: #{tpu_custom_call.1} parent=51 // pred_check
          %p457 = pneg %p135
        $region54: #{tpu_custom_call.1} parent=51 // pred_check_branch
          %459 = sbr.rel (%p457) target = $region56
        $region55: #{tpu_custom_call.1} parent=51 // pred_region
          %s460 = sand.u32 %s120, 1
          %s461 = scalar_lea.sflag [#allocation4], %s460
          %s462 = sand.u32 %s120, 1
          %s463 = smul.addr %s462, 8
          %s464 = scalar_lea.vmem [#allocation7], %s463
          %466 = dma.done %s461, 128
        $region56: #{tpu_custom_call.1} parent=51 // pred_fallthru
          _
      $region52: #{tpu_custom_call.1} parent=5 // pred_fallthru
        _
    $region6: #{tpu_custom_call.1} parent=1 // loop_footer
      %s21 = sadd.s32 1, %s17
    $region7: #{tpu_custom_call.1} parent=1 // loop_footer_branch
      %16 = sbr.rel target = $region3
    $region8: #{tpu_custom_call.1} parent=1 // loop_exit
      _
    %467 = vsyncpa [#allocation3], 1
    %s468 = scalar_lea.sflag [#allocation3], 1
    %469 = vsyncpa %s468, 1
    %470 = vsyncpa [#allocation6], 1
    %471 = vsyncpa [#allocation4], 1
    %s472 = scalar_lea.sflag [#allocation4], 1
    %473 = vsyncpa %s472, 1

</llo_original>
